<compile_context>
chip_gen: v5e
topology: v5e:2x2
jax: 0.10.0
libtpu: 0.0.40
codegen_flags: <defaults>
</compile_context>

<pallas_src>
import functools

import jax
import jax.numpy as jnp
from jax.experimental import pallas as pl
from jax.experimental.pallas import tpu as pltpu

EPS = 1e-5


def _evonorm_kernel(x_ref, p_ref, o_ref, *, eps):
    # x_ref: (tile_rows, HW) in x.dtype ; p_ref: (tile_rows, 4) f32 ; o_ref like x_ref
    p = p_ref[...]
    v       = p[:, 0:1]
    sqrt_rv = p[:, 1:2]                    # sqrt(running_var + eps), precomputed
    w       = p[:, 2:3]
    b       = p[:, 3:4]

    inv_hw = 1.0 / x_ref.shape[-1]

    # Pass 1: per-row mean (only (rows, 1) stats stay live past this point).
    mean = jnp.sum(x_ref[...].astype(jnp.float32), axis=-1, keepdims=True) * inv_hw

    # Pass 2: per-row centered variance (two-pass, matches torch.var numerics).
    xc = x_ref[...].astype(jnp.float32) - mean
    var_inst = jnp.sum(xc * xc, axis=-1, keepdims=True) * inv_hw
    sq_inst = jnp.sqrt(var_inst + eps)

    # Pass 3: elementwise output.  d >= sqrt(eps) > 0 so the reciprocal is safe.
    x = x_ref[...].astype(jnp.float32)
    d = jnp.maximum(x * v + sq_inst, sqrt_rv)
    inv_d = pl.reciprocal(d, approx=True)          # EUP slot (otherwise idle)
    inv_d = inv_d * (2.0 - d * inv_d)              # one Newton-Raphson refinement
    o_ref[...] = ((x * inv_d) * w + b).astype(o_ref.dtype)


def _round_up(a, m):
    return (a + m - 1) // m * m


def _choose_tile_rows(nc, hw, itemsize, sublane):
    # VMEM per tile row (bytes): double-buffered input + output blocks,
    # ~2 internal f32 temporaries (cast / centered values), and the
    # lane-padded (rows, 4) f32 parameter block (double-buffered).
    bytes_per_row = 4 * hw * itemsize + 2 * hw * 4 + 1024
    vmem_budget = 40 * 1024 * 1024                     # fits v7x's 64 MiB/TC
    rows_fit = max(sublane, (vmem_budget // bytes_per_row) // sublane * sublane)

    # Prefer >= 8 grid steps (pipelining + 2-TC sharding on v7x), but never
    # shrink a tile below ~1 MiB just to manufacture steps.
    rows_for_steps = max(sublane, (nc // 8) // sublane * sublane)
    rows_1mb = _round_up(max(1, pl.cdiv(1 << 20, hw * itemsize)), sublane)
    rows_target = max(rows_for_steps, rows_1mb)

    return max(sublane, min(rows_fit, rows_target, _round_up(nc, sublane)))


def evo_norm_batch2d(x, weight, bias, v, running_var, eps=EPS):
    """Eval-mode EvoNormBatch2d forward. x: (N, C, H, W); params: (C,) each."""
    N, C, H, W = x.shape
    NC, HW = N * C, H * W
    itemsize = jnp.dtype(x.dtype).itemsize
    sublane = max(8, 32 // itemsize)                   # 8 f32 / 16 bf16 / 32 int8

    x2d = x.reshape(NC, HW)

    # Fused per-row parameter slab, kept f32: [v, sqrt(running_var+eps), w, b].
    p_c = jnp.stack(
        [v.astype(jnp.float32),
         jnp.sqrt(running_var.astype(jnp.float32) + eps),
         weight.astype(jnp.float32),
         bias.astype(jnp.float32)], axis=-1)           # (C, 4)
    p_rows = jnp.tile(p_c, (N, 1))                     # (NC, 4), row = n*C + c

    tile_rows = _choose_tile_rows(NC, HW, itemsize, sublane)
    grid = (pl.cdiv(NC, tile_rows),)

    used = tile_rows * (4 * HW * itemsize + 2 * HW * 4 + 1024)
    vmem_limit = int(min(max(used + (8 << 20), 32 << 20), 96 << 20))

    out2d = pl.pallas_call(
        functools.partial(_evonorm_kernel, eps=eps),
        out_shape=jax.ShapeDtypeStruct((NC, HW), x.dtype),
        grid_spec=pltpu.PrefetchScalarGridSpec(
            num_scalar_prefetch=0,
            grid=grid,
            in_specs=[
                pl.BlockSpec((tile_rows, HW), lambda i: (i, 0)),
                pl.BlockSpec((tile_rows, 4), lambda i: (i, 0)),
            ],
            out_specs=pl.BlockSpec((tile_rows, HW), lambda i: (i, 0)),
        ),
        compiler_params=pltpu.CompilerParams(
            dimension_semantics=("parallel",),
            vmem_limit_bytes=vmem_limit,
        ),
    )(x2d, p_rows)

    return out2d.reshape(N, C, H, W)


def _reference(x, weight, bias, v, running_var, eps=EPS):
    # Pure-JAX reference of the eval-mode forward for validation.
    xf = x.astype(jnp.float32)
    rv = running_var.reshape(1, -1, 1, 1).astype(jnp.float32)
    var_inst = jnp.var(xf, axis=(2, 3), keepdims=True)
    d = xf * v.reshape(1, -1, 1, 1).astype(jnp.float32) + jnp.sqrt(var_inst + eps)
    d = jnp.maximum(d, jnp.sqrt(rv + eps))
    y = xf / d
    out = (y * weight.reshape(1, -1, 1, 1).astype(jnp.float32)
           + bias.reshape(1, -1, 1, 1).astype(jnp.float32))
    return out.astype(x.dtype)


def _make_params(C):
    weight = 1.0 + 0.05 * jnp.arange(C, dtype=jnp.float32)
    bias = 0.01 * jnp.arange(C, dtype=jnp.float32)
    v = 1.0 - 0.03 * jnp.arange(C, dtype=jnp.float32)
    running_var = 0.5 + 0.1 * jnp.arange(C, dtype=jnp.float32)
    return weight, bias, v, running_var


if __name__ == "__main__":
    key = jax.random.PRNGKey(0)

    # Primary check: f32, evenly tiled.
    N, C, H, W = 2, 4, 16, 16
    k0, k1 = jax.random.split(key)
    x = jax.random.normal(k0, (N, C, H, W), dtype=jnp.float32)
    weight, bias, v, running_var = _make_params(C)
    out = jax.block_until_ready(evo_norm_batch2d(x, weight, bias, v, running_var))
    ref = _reference(x, weight, bias, v, running_var)
    assert jnp.allclose(out, ref, atol=1e-5, rtol=1e-5)

    # Ragged check: N*C not a multiple of the sublane, HW not a multiple of 128.
    N2, C2, H2, W2 = 2, 5, 12, 16
    x2 = jax.random.normal(k1, (N2, C2, H2, W2), dtype=jnp.float32)
    w2, b2, v2, rv2 = _make_params(C2)
    out2 = jax.block_until_ready(evo_norm_batch2d(x2, w2, b2, v2, rv2))
    ref2 = _reference(x2, w2, b2, v2, rv2)
    assert jnp.allclose(out2, ref2, atol=1e-5, rtol=1e-5)

    # bf16 check (dtype-aware sublane path), looser tolerance.
    xb = x.astype(jnp.bfloat16)
    outb = jax.block_until_ready(evo_norm_batch2d(xb, weight, bias, v, running_var))
    refb = _reference(xb, weight, bias, v, running_var)
    assert jnp.allclose(outb.astype(jnp.float32), refb.astype(jnp.float32),
                        atol=3e-2, rtol=3e-2)

    print("KERNEL_OK")
</pallas_src>

<mosaic_0001>
module attributes {stable_mosaic.version = 11 : i64} {
  func.func @_evonorm_kernel(%arg0: i32, %arg1: memref<8x256xf32, #tpu.memory_space<vmem>>, %arg2: memref<8x4xf32, #tpu.memory_space<vmem>>, %arg3: memref<8x256xf32, #tpu.memory_space<vmem>>) attributes {dimension_semantics = [#tpu.dimension_semantics<parallel>], iteration_bounds = array<i64: 1>, scalar_prefetch = 0 : i64, scratch_operands = 0 : i64, tpu.core_type = #tpu.core_type<tc>, window_params = [{transform_indices = @transform_0, window_bounds = array<i64: 8, 256>}, {transform_indices = @transform_1, window_bounds = array<i64: 8, 4>}, {transform_indices = @transform_2, window_bounds = array<i64: 8, 256>}]} {
    %c0 = arith.constant 0 : index
    %c0_0 = arith.constant 0 : index
    %0 = vector.load %arg2[%c0, %c0_0] : memref<8x4xf32, #tpu.memory_space<vmem>>, vector<8x4xf32>
    %1 = vector.extract_strided_slice %0 {offsets = [0, 0], sizes = [8, 1], strides = [1, 1]} : vector<8x4xf32> to vector<8x1xf32>
    %2 = vector.extract_strided_slice %0 {offsets = [0, 1], sizes = [8, 1], strides = [1, 1]} : vector<8x4xf32> to vector<8x1xf32>
    %3 = vector.extract_strided_slice %0 {offsets = [0, 2], sizes = [8, 1], strides = [1, 1]} : vector<8x4xf32> to vector<8x1xf32>
    %4 = vector.extract_strided_slice %0 {offsets = [0, 3], sizes = [8, 1], strides = [1, 1]} : vector<8x4xf32> to vector<8x1xf32>
    %c0_1 = arith.constant 0 : index
    %c0_2 = arith.constant 0 : index
    %5 = vector.load %arg1[%c0_1, %c0_2] : memref<8x256xf32, #tpu.memory_space<vmem>>, vector<8x256xf32>
    %cst = arith.constant dense<0.000000e+00> : vector<8xf32>
    %6 = vector.multi_reduction <add>, %5, %cst [1] : vector<8x256xf32> to vector<8xf32>
    %7 = vector.shape_cast %6 : vector<8xf32> to vector<8x1xf32>
    %cst_3 = arith.constant 3.906250e-03 : f32
    %8 = vector.broadcast %cst_3 : f32 to vector<8x1xf32>
    %9 = arith.mulf %7, %8 : vector<8x1xf32>
    %c0_4 = arith.constant 0 : index
    %c0_5 = arith.constant 0 : index
    %10 = vector.load %arg1[%c0_4, %c0_5] : memref<8x256xf32, #tpu.memory_space<vmem>>, vector<8x256xf32>
    %11 = vector.broadcast %9 : vector<8x1xf32> to vector<8x256xf32>
    %12 = arith.subf %10, %11 : vector<8x256xf32>
    %13 = arith.mulf %12, %12 : vector<8x256xf32>
    %cst_6 = arith.constant dense<0.000000e+00> : vector<8xf32>
    %14 = vector.multi_reduction <add>, %13, %cst_6 [1] : vector<8x256xf32> to vector<8xf32>
    %15 = vector.shape_cast %14 : vector<8xf32> to vector<8x1xf32>
    %cst_7 = arith.constant 3.906250e-03 : f32
    %16 = vector.broadcast %cst_7 : f32 to vector<8x1xf32>
    %17 = arith.mulf %15, %16 : vector<8x1xf32>
    %cst_8 = arith.constant 9.99999974E-6 : f32
    %18 = vector.broadcast %cst_8 : f32 to vector<8x1xf32>
    %19 = arith.addf %17, %18 : vector<8x1xf32>
    %20 = math.sqrt %19 : vector<8x1xf32>
    %c0_9 = arith.constant 0 : index
    %c0_10 = arith.constant 0 : index
    %21 = vector.load %arg1[%c0_9, %c0_10] : memref<8x256xf32, #tpu.memory_space<vmem>>, vector<8x256xf32>
    %22 = vector.broadcast %1 : vector<8x1xf32> to vector<8x256xf32>
    %23 = arith.mulf %21, %22 : vector<8x256xf32>
    %24 = vector.broadcast %20 : vector<8x1xf32> to vector<8x256xf32>
    %25 = arith.addf %23, %24 : vector<8x256xf32>
    %26 = vector.broadcast %2 : vector<8x1xf32> to vector<8x256xf32>
    %27 = arith.maximumf %25, %26 : vector<8x256xf32>
    %28 = tpu.reciprocal %27 {approx = true} : vector<8x256xf32> -> vector<8x256xf32>
    %29 = arith.mulf %27, %28 : vector<8x256xf32>
    %cst_11 = arith.constant 2.000000e+00 : f32
    %30 = vector.broadcast %cst_11 : f32 to vector<8x256xf32>
    %31 = arith.subf %30, %29 : vector<8x256xf32>
    %32 = arith.mulf %28, %31 : vector<8x256xf32>
    %33 = arith.mulf %21, %32 : vector<8x256xf32>
    %34 = vector.broadcast %3 : vector<8x1xf32> to vector<8x256xf32>
    %35 = arith.mulf %33, %34 : vector<8x256xf32>
    %36 = vector.broadcast %4 : vector<8x1xf32> to vector<8x256xf32>
    %37 = arith.addf %35, %36 : vector<8x256xf32>
    %c0_12 = arith.constant 0 : index
    %c0_13 = arith.constant 0 : index
    %38 = vector.load %arg3[%c0_12, %c0_13] : memref<8x256xf32, #tpu.memory_space<vmem>>, vector<8x256xf32>
    tpu.vector_store %arg3[%c0_12, %c0_13], %37 {strides = array<i32>} : memref<8x256xf32, #tpu.memory_space<vmem>>, vector<8x256xf32>,
    return
  }
  func.func @transform_0(%arg0: i32) -> (i32, i32) {
    %c0_i32 = arith.constant 0 : i32
    %c0_i32_0 = arith.constant 0 : i32
    return %arg0, %c0_i32 : i32, i32
  }
  func.func @transform_1(%arg0: i32) -> (i32, i32) {
    %c0_i32 = arith.constant 0 : i32
    %c0_i32_0 = arith.constant 0 : i32
    return %arg0, %c0_i32 : i32, i32
  }
  func.func @transform_2(%arg0: i32) -> (i32, i32) {
    %c0_i32 = arith.constant 0 : i32
    %c0_i32_0 = arith.constant 0 : i32
    return %arg0, %c0_i32 : i32, i32
  }
}

</mosaic_0001>

<llo_original>
// kernel: tpu_custom_call.1
$region0: #{tpu_custom_call.1}
  #allocation0 [shape = 'u32[]', space=smem, size = 0x4, offset = 0x4, fixed_abs, tag = 'smem constant byte address 0x4 - core index']
  #allocation1 [shape = 'u32[72,128]{1,0:T(1,128)}', space=vmem, size = 0x9000, scoped, tag = 'internal scratch']
  %s0 = inlined_call_operand.hbm [shape: f32[8,256], index: 0, kind: input, shape index: {}]
  %s1 = inlined_call_operand.vmem [shape: f32[8,4], index: 1, kind: input, shape index: {}]
  %s2 = inlined_call_operand.hbm [shape: f32[8,256], index: 2, kind: output, shape index: {}]
  %s3 = sld [smem:[#allocation0]]
  $region22: #{tpu_custom_call.1} parent=0
    _
  %s5 = ssub.s32 1, %s3
  %s6 = scalar_select 0, %s5, %s3
  $region1: #{tpu_custom_call.1} parent=0
    #allocation2 [shape = 'u8[8192]{0}', space=vmem, size = 0x2000, scoped, tag = 'input window, operand 0, single buffered']
    #allocation3 [shape = 's32[1]{0}', space=sflag, size = 0x4, scoped, tag = 'scoped memory for tpu_custom_call.1']
    #allocation4 [shape = 's32[1]{0}', space=sflag, size = 0x4, scoped, tag = 'scoped memory for tpu_custom_call.1']
    #allocation5 [shape = 'u8[8192]{0}', space=vmem, size = 0x2000, scoped, tag = 'output window, operand 0, single buffered']
    %7 = vsyncpa [#allocation3], 0
    %8 = vsyncpa [#allocation4], 0
    // Predicated region
    $region2: #{tpu_custom_call.1} parent=1 // pred_check
      _
    $region3: #{tpu_custom_call.1} parent=1 // pred_check_branch
      %10 = sbr.rel (0) target = $region5
    $region4: #{tpu_custom_call.1} parent=1 // pred_region
      %12 = vsyncadd [#allocation3], 0
      %s14 = sshll.u32 %s0, 4
      %s15 = int_to_ptr.hbm [resolvable:$true] %s14
      %s16 = sshll.u32 [#allocation2], 4
      %s17 = int_to_ptr.vmem [resolvable:$true] %s16
      %19 = dma.hbm_to_vmem [thread:$0]  %s15, 256, %s17, [#allocation3]
    $region5: #{tpu_custom_call.1} parent=1 // pred_fallthru
      _
    // Predicated region
    $region6: #{tpu_custom_call.1} parent=1 // pred_check
      _
    $region7: #{tpu_custom_call.1} parent=1 // pred_check_branch
      %21 = sbr.rel (0) target = $region9
    $region8: #{tpu_custom_call.1} parent=1 // pred_region
      _
    $region9: #{tpu_custom_call.1} parent=1 // pred_fallthru
      _
    // Predicated region
    $region10: #{tpu_custom_call.1} parent=1 // pred_check
      _
    $region11: #{tpu_custom_call.1} parent=1 // pred_check_branch
      %23 = sbr.rel (0) target = $region13
    $region12: #{tpu_custom_call.1} parent=1 // pred_region
      %25 = dma.done [#allocation3], 256
    $region13: #{tpu_custom_call.1} parent=1 // pred_fallthru
      _
    %v26 = vld [vmem:[%s1] sm:$0xff]
    %v27 = vld [vmem:[#allocation2] sm:$0xff]
    %v28 = vld [vmem:[#allocation2 + $0x8] sm:$0xff]
    %v29 = vadd.f32 %v27, %v28
    %30 = vadd.xlane.f32.xlu0 %v29
    %v31 = vpop.xlane.xlu0 %30
    %v32 = vmul.f32 %v31, 0.00390625
    %v33 = vsub.f32 %v27, %v32
    %v34 = vsub.f32 %v28, %v32
    %v35 = vmul.f32 %v33, %v33
    %v36 = vmul.f32 %v34, %v34
    %v37 = vadd.f32 %v35, %v36
    %38 = vadd.xlane.f32.xlu0 %v37
    %v39 = vpop.xlane.xlu0 %38
    %v40 = vmul.f32 %v39, 0.00390625
    %v41 = vadd.f32 %v40, 1e-05
    %v42 = vrsqrt.pop %v41
    %v43 = vmul.f32 %v42, %v41
    %v44 = vmul.f32 %v43, %v42
    %v45 = vmul.f32 0.5, %v44
    %v46 = vsub.f32 1.5, %v45
    %v47 = vmul.f32 %v42, %v46
    %v48 = vmul.f32 %v41, %v47
    %vm49 = vcmp.eq.f32.partialorder %v41, inf
    %v50 = vsel %vm49, %v41, %v48
    %vm51 = vcmp.eq.f32.partialorder %v41, 0.0
    %v52 = vand.u32 %v41, 2147483648
    %v53 = vsel %vm51, %v52, %v50
    %55 = vset.pattern.permute.xlu0 0
    %56 = vperm.xlu0 %55, %v26
    %v57 = vpop.permute.xlu0 %56
    %v59 = vmul.f32 %v27, %v57
    %v60 = vmul.f32 %v28, %v57
    %v61 = vadd.f32 %v59, %v53
    %v62 = vadd.f32 %v60, %v53
    %63 = vset.pattern.permute.xlu0 1
    %64 = vperm.xlu0 %63, %v26
    %v65 = vpop.permute.xlu0 %64
    %v67 = vmax.f32 %v61, %v65
    %v68 = vmax.f32 %v62, %v65
    %v69 = vrcp.pop %v67
    %v70 = vrcp.pop %v68
    %v71 = vmul.f32 %v67, %v69
    %v72 = vmul.f32 %v68, %v70
    %v73 = vsub.f32 2.0, %v71
    %v74 = vsub.f32 2.0, %v72
    %v75 = vmul.f32 %v69, %v73
    %v76 = vmul.f32 %v70, %v74
    %v77 = vmul.f32 %v27, %v75
    %v78 = vmul.f32 %v28, %v76
    %79 = vset.pattern.permute.xlu0 2
    %80 = vperm.xlu0 %79, %v26
    %v81 = vpop.permute.xlu0 %80
    %v83 = vmul.f32 %v77, %v81
    %v84 = vmul.f32 %v78, %v81
    %85 = vset.pattern.permute.xlu0 3
    %86 = vperm.xlu0 %85, %v26
    %v87 = vpop.permute.xlu0 %86
    %v89 = vadd.f32 %v83, %v87
    %v90 = vadd.f32 %v84, %v87
    %91 = vst [vmem:[#allocation5] sm:$0xff] %v89
    %92 = vst [vmem:[#allocation5 + $0x8] sm:$0xff] %v90
    // Predicated region
    $region14: #{tpu_custom_call.1} parent=1 // pred_check
      _
    $region15: #{tpu_custom_call.1} parent=1 // pred_check_branch
      %94 = sbr.rel (0) target = $region17
    $region16: #{tpu_custom_call.1} parent=1 // pred_region
      %96 = vsyncadd [#allocation4], 0
      %s98 = sshll.u32 [#allocation5], 4
      %s99 = int_to_ptr.vmem [resolvable:$true] %s98
      %s100 = sshll.u32 %s2, 4
      %s101 = int_to_ptr.hbm [resolvable:$true] %s100
      %103 = dma.vmem_to_hbm [thread:$0]  %s99, 256, %s101, [#allocation4]
    $region17: #{tpu_custom_call.1} parent=1 // pred_fallthru
      _
    // Predicated region
    $region18: #{tpu_custom_call.1} parent=1 // pred_check
      _
    $region19: #{tpu_custom_call.1} parent=1 // pred_check_branch
      %105 = sbr.rel (0) target = $region21
    $region20: #{tpu_custom_call.1} parent=1 // pred_region
      %107 = dma.done [#allocation4], 256
    $region21: #{tpu_custom_call.1} parent=1 // pred_fallthru
      _
    %108 = vsyncpa [#allocation3], 1
    %109 = vsyncpa [#allocation4], 1

</llo_original>
